<compile_context>
chip_gen: v6e
topology: v6e:2x2x1
jax: 0.10.0
libtpu: 0.0.40
codegen_flags: <defaults>
</compile_context>

<pallas_src>
import functools
import math

import jax
import jax.numpy as jnp
from jax import lax
from jax.experimental import pallas as pl
from jax.experimental.pallas import tpu as pltpu

_VMEM_LIMIT = 32 * 1024 * 1024  # safe on v5e/v6e/v7x; tiles below stay well under it


# ----------------------------- tiling helpers ------------------------------

def _pick_tile(dim, target, align):
    """Largest tile <= target that is a multiple of `align` and divides `dim`;
    falls back to the full dimension (always a legal block size)."""
    if dim <= target:
        return dim
    t = (target // align) * align
    while t >= align:
        if dim % t == 0:
            return t
        t -= align
    return dim


def _largest_divisor(n, cap):
    d = min(n, cap)
    while d > 1 and n % d:
        d -= 1
    return max(d, 1)


# ----------------------------- Pallas kernels ------------------------------

def _matmul_res_kernel(x_ref, w_ref, b_ref, r_ref, o_ref, acc_ref, *, activation):
    """K-tiled matmul: o = act(x @ w + b) + residual.  f32 accumulator, bf16 MXU."""
    k = pl.program_id(2)

    @pl.when(k == 0)
    def _():
        acc_ref[...] = jnp.zeros_like(acc_ref)

    acc_ref[...] += jnp.dot(
        x_ref[...].astype(jnp.bfloat16),
        w_ref[...].astype(jnp.bfloat16),
        preferred_element_type=jnp.float32)

    @pl.when(k == pl.num_programs(2) - 1)
    def _():
        y = acc_ref[...] + b_ref[...]
        if activation == "gelu":
            y = jax.nn.gelu(y, approximate=True)
        y = y + r_ref[...]                      # fused residual add (free on VPU)
        o_ref[...] = y.astype(o_ref.dtype)


def matmul_residual(x, w, b, res, activation="none"):
    """x:(M,K) @ w:(K,N) + b + res, tiled over (M, N, K)."""
    M, K = x.shape
    _, N = w.shape
    tm = _pick_tile(M, 256, 8)
    tn = _pick_tile(N, 256, 128)
    tk = _pick_tile(K, 512, 128)
    kernel = functools.partial(_matmul_res_kernel, activation=activation)
    return pl.pallas_call(
        kernel,
        out_shape=jax.ShapeDtypeStruct((M, N), x.dtype),
        grid=(M // tm, N // tn, K // tk),
        in_specs=[
            pl.BlockSpec((tm, tk), lambda i, j, k: (i, k)),
            pl.BlockSpec((tk, tn), lambda i, j, k: (k, j)),
            pl.BlockSpec((1, tn), lambda i, j, k: (0, j)),
            pl.BlockSpec((tm, tn), lambda i, j, k: (i, j)),
        ],
        out_specs=pl.BlockSpec((tm, tn), lambda i, j, k: (i, j)),
        scratch_shapes=[pltpu.VMEM((tm, tn), jnp.float32)],
        compiler_params=pltpu.CompilerParams(
            dimension_semantics=("parallel", "parallel", "arbitrary"),
            vmem_limit_bytes=_VMEM_LIMIT),
    )(x, w, b.reshape(1, N), res)


def _norm_matmul_kernel(x_ref, g_ref, b_ref, sc_ref, sh_ref, w_ref, bias_ref,
                        o_ref, h_sc, *, eps, activation):
    """Fused (Ada)LayerNorm -> matmul.

    The normalized activation is computed once per row tile (ni == 0), cached
    in bf16 VMEM scratch, and reused for every output-column tile; it never
    round-trips HBM.
    """
    ni = pl.program_id(2)

    @pl.when(ni == 0)
    def _():
        x = x_ref[0].astype(jnp.float32)                     # (tt, C)
        mu = jnp.mean(x, axis=-1, keepdims=True)
        var = jnp.mean(jnp.square(x - mu), axis=-1, keepdims=True)
        h = (x - mu) * lax.rsqrt(var + eps) * g_ref[0] + b_ref[0]
        h = h * (1.0 + sc_ref[0]) + sh_ref[0]                # conditional modulation
        h_sc[...] = h.astype(jnp.bfloat16)

    y = jnp.dot(h_sc[...], w_ref[...].astype(jnp.bfloat16),
                preferred_element_type=jnp.float32)
    y = y + bias_ref[...]
    if activation == "gelu":
        y = jax.nn.gelu(y, approximate=True)
    o_ref[0] = y.astype(o_ref.dtype)


def norm_matmul(x, g, beta, sc, sh, w, bias, activation="none", eps=1e-5):
    """x:(b,t,C); sc,sh:(b,C) per-sample scale/shift; returns (b,t,N)."""
    b, t, C = x.shape
    N = w.shape[1]
    tt = _pick_tile(t, 256, 8)
    tn = _pick_tile(N, 256, 128)
    kernel = functools.partial(_norm_matmul_kernel, eps=eps, activation=activation)
    return pl.pallas_call(
        kernel,
        out_shape=jax.ShapeDtypeStruct((b, t, N), x.dtype),
        grid=(b, t // tt, N // tn),
        in_specs=[
            pl.BlockSpec((1, tt, C), lambda bi, ti, ni: (bi, ti, 0)),
            pl.BlockSpec((1, 1, C), lambda bi, ti, ni: (0, 0, 0)),
            pl.BlockSpec((1, 1, C), lambda bi, ti, ni: (0, 0, 0)),
            pl.BlockSpec((1, 1, C), lambda bi, ti, ni: (bi, 0, 0)),
            pl.BlockSpec((1, 1, C), lambda bi, ti, ni: (bi, 0, 0)),
            pl.BlockSpec((C, tn), lambda bi, ti, ni: (0, ni)),
            pl.BlockSpec((1, tn), lambda bi, ti, ni: (0, ni)),
        ],
        out_specs=pl.BlockSpec((1, tt, tn), lambda bi, ti, ni: (bi, ti, ni)),
        scratch_shapes=[pltpu.VMEM((tt, C), jnp.bfloat16)],
        compiler_params=pltpu.CompilerParams(
            # ni is carried via the cached-LN scratch -> must be sequential
            dimension_semantics=("parallel", "parallel", "arbitrary"),
            vmem_limit_bytes=_VMEM_LIMIT),
    )(x, g.reshape(1, 1, C), beta.reshape(1, 1, C),
      sc.reshape(b, 1, C), sh.reshape(b, 1, C), w, bias.reshape(1, N))


def _flash_attn_kernel(q_ref, k_ref, v_ref, o_ref, m_sc, l_sc, acc_sc, *,
                       scale, tq):
    """Flash-style causal attention with online softmax + causal tile skipping."""
    qi = pl.program_id(1)
    ki = pl.program_id(2)

    @pl.when(ki == 0)
    def _():
        m_sc[...] = jnp.full_like(m_sc, -1e30)
        l_sc[...] = jnp.zeros_like(l_sc)
        acc_sc[...] = jnp.zeros_like(acc_sc)

    # tq == tkv, so a kv tile with ki > qi is entirely above the causal diagonal.
    @pl.when(ki <= qi)
    def _():
        q = (q_ref[...].astype(jnp.float32) * scale).astype(jnp.bfloat16)
        k = k_ref[...].astype(jnp.bfloat16)
        s = jnp.einsum("hqd,hkd->hqk", q, k,
                       preferred_element_type=jnp.float32)        # (hps, tq, tkv)
        row = qi * tq + lax.broadcasted_iota(jnp.int32, s.shape, 1)
        col = ki * tq + lax.broadcasted_iota(jnp.int32, s.shape, 2)
        s = jnp.where(col <= row, s, -1e30)

        m_prev = m_sc[...]
        m_new = jnp.maximum(m_prev, jnp.max(s, axis=-1, keepdims=True))
        alpha = jnp.exp(m_prev - m_new)
        p = jnp.exp(s - m_new)
        l_sc[...] = alpha * l_sc[...] + jnp.sum(p, axis=-1, keepdims=True)
        acc_sc[...] = alpha * acc_sc[...] + jnp.einsum(
            "hqk,hkd->hqd", p.astype(jnp.bfloat16),
            v_ref[...].astype(jnp.bfloat16),
            preferred_element_type=jnp.float32)
        m_sc[...] = m_new

    # ki == qi is the last causally relevant kv tile for this query tile, so
    # finalize there; the remaining (skipped) kv iterations are pure no-ops.
    @pl.when(ki == qi)
    def _():
        inv = pl.reciprocal(l_sc[...], approx=True)
        o_ref[...] = (acc_sc[...] * inv).astype(o_ref.dtype)


def causal_flash_attention(q, k, v):
    """q,k,v: (B*H, T, D) -> (B*H, T, D)."""
    BH, T, D = q.shape
    scale = 1.0 / math.sqrt(D)
    hps = _largest_divisor(BH, 8)                 # several heads per grid step
    tq = _pick_tile(T, 128, 8)                    # also used as kv tile size
    nq = T // tq
    q_spec = pl.BlockSpec((hps, tq, D), lambda h, qi, ki: (h, qi, 0))
    # clamp kv block index so fully-masked (skipped) tiles are never fetched
    kv_spec = pl.BlockSpec((hps, tq, D),
                           lambda h, qi, ki: (h, jnp.minimum(ki, qi), 0))
    kernel = functools.partial(_flash_attn_kernel, scale=scale, tq=tq)
    return pl.pallas_call(
        kernel,
        out_shape=jax.ShapeDtypeStruct((BH, T, D), q.dtype),
        grid=(BH // hps, nq, nq),
        in_specs=[q_spec, kv_spec, kv_spec],
        out_specs=q_spec,
        scratch_shapes=[pltpu.VMEM((hps, tq, 1), jnp.float32),
                        pltpu.VMEM((hps, tq, 1), jnp.float32),
                        pltpu.VMEM((hps, tq, D), jnp.float32)],
        compiler_params=pltpu.CompilerParams(
            dimension_semantics=("parallel", "parallel", "arbitrary"),
            vmem_limit_bytes=_VMEM_LIMIT),
    )(q, k, v)


# ------------------------------ model glue ---------------------------------

def cond_block(x, cond, p, n_head):
    b, t, C = x.shape
    D = C // n_head
    M = b * t

    # cond -> (scale, shift) projections: tiny (b x C @ C x 2C), leave to XLA
    ss1 = jnp.dot(cond, p["ada1_W"]) + p["ada1_b"]
    sc1, sh1 = jnp.split(ss1, 2, axis=-1)
    ss2 = jnp.dot(cond, p["ada2_W"]) + p["ada2_b"]
    sc2, sh2 = jnp.split(ss2, 2, axis=-1)

    # AdaLN1 fused with qkv projection
    qkv = norm_matmul(x, p["ln1_g"], p["ln1_b"], sc1, sh1,
                      p["qkv_W"], p["qkv_b"])                 # (b, t, 3C)
    qkv = qkv.reshape(b, t, 3, n_head, D)
    q = qkv[:, :, 0].transpose(0, 2, 1, 3).reshape(b * n_head, t, D)
    k = qkv[:, :, 1].transpose(0, 2, 1, 3).reshape(b * n_head, t, D)
    v = qkv[:, :, 2].transpose(0, 2, 1, 3).reshape(b * n_head, t, D)

    a = causal_flash_attention(q, k, v)
    a = a.reshape(b, n_head, t, D).transpose(0, 2, 1, 3).reshape(M, C)

    # attention output projection with fused residual add
    x2 = matmul_residual(a, p["proj_W"], p["proj_b"], x.reshape(M, C))

    # AdaLN2 fused with MLP fc + GELU
    h = norm_matmul(x2.reshape(b, t, C), p["ln2_g"], p["ln2_b"], sc2, sh2,
                    p["fc_W"], p["fc_b"], activation="gelu")  # (b, t, 4C)

    # MLP projection with fused residual add
    x2 = matmul_residual(h.reshape(M, 4 * C), p["mlp_W"], p["mlp_b"], x2)
    return x2.reshape(b, t, C)


def gpt_conditional_forward(params, idx, cond, cfg, targets=None, pad_token=-100):
    b, t = idx.shape
    assert t <= cfg["block_size"], "Cannot forward, model block size is exhausted."
    C, V = cfg["n_embd"], cfg["vocab_size"]

    tok = params["tok_emb"][idx]                      # embedding gather (plain JAX)
    x = tok + params["pos_emb"][:, :t, :]
    # dropout(embd_pdrop): identity in eval mode
    for blk in params["blocks"]:
        x = cond_block(x, cond, blk, cfg["n_head"])

    # final LayerNorm fused with lm-head matmul (no cond modulation, no bias)
    zeros_c = jnp.zeros((b, C), x.dtype)
    logits = norm_matmul(x, params["ln_f_g"], params["ln_f_b"],
                         zeros_c, zeros_c,
                         params["head_W"], jnp.zeros((V,), x.dtype))  # (b, t, V)

    loss = None
    if targets is not None:
        logp = jax.nn.log_softmax(logits.reshape(-1, V), axis=-1)
        tgt = targets.reshape(-1)
        valid = tgt != pad_token
        tgt_c = jnp.where(valid, tgt, 0)
        nll = -jnp.take_along_axis(logp, tgt_c[:, None], axis=-1)[:, 0]
        loss = jnp.sum(jnp.where(valid, nll, 0.0)) / jnp.maximum(jnp.sum(valid), 1)
    return logits, loss


def init_params(key, cfg):
    C, V, L, BS = cfg["n_embd"], cfg["vocab_size"], cfg["n_layer"], cfg["block_size"]

    def nrm(k, shape):
        return 0.02 * jax.random.normal(k, shape, jnp.float32)

    keys = jax.random.split(key, 2 + L)
    params = dict(
        tok_emb=nrm(keys[0], (V, C)),
        pos_emb=jnp.zeros((1, BS, C), jnp.float32),
        ln_f_g=jnp.ones((C,), jnp.float32),
        ln_f_b=jnp.zeros((C,), jnp.float32),
        head_W=nrm(keys[1], (C, V)),
        blocks=[],
    )
    for l in range(L):
        bk = jax.random.split(keys[2 + l], 6)
        params["blocks"].append(dict(
            ln1_g=jnp.ones((C,)), ln1_b=jnp.zeros((C,)),
            ln2_g=jnp.ones((C,)), ln2_b=jnp.zeros((C,)),
            ada1_W=nrm(bk[0], (C, 2 * C)), ada1_b=jnp.zeros((2 * C,)),
            ada2_W=nrm(bk[1], (C, 2 * C)), ada2_b=jnp.zeros((2 * C,)),
            qkv_W=nrm(bk[2], (C, 3 * C)), qkv_b=jnp.zeros((3 * C,)),
            proj_W=nrm(bk[3], (C, C)), proj_b=jnp.zeros((C,)),
            fc_W=nrm(bk[4], (C, 4 * C)), fc_b=jnp.zeros((4 * C,)),
            mlp_W=nrm(bk[5], (4 * C, C)), mlp_b=jnp.zeros((C,)),
        ))
    return params


if __name__ == "__main__":
    cfg = dict(vocab_size=32, block_size=8, n_embd=32, n_head=4, n_layer=2)
    key = jax.random.PRNGKey(0)
    k_par, k_idx, k_cond = jax.random.split(key, 3)

    params = init_params(k_par, cfg)
    idx = jax.random.randint(k_idx, (2, 8), 0, cfg["vocab_size"], dtype=jnp.int32)
    cond = jax.random.normal(k_cond, (2, cfg["n_embd"]), jnp.float32)

    logits, loss = gpt_conditional_forward(params, idx, cond, cfg, targets=None)
    logits = jax.block_until_ready(logits)
    assert logits.shape == (2, 8, cfg["vocab_size"])
    assert jnp.all(jnp.isfinite(logits))
    print("KERNEL_OK")
</pallas_src>

<mosaic_0001>
module attributes {stable_mosaic.version = 11 : i64} {
  func.func @_norm_matmul_kernel(%arg0: i32, %arg1: i32, %arg2: i32, %arg3: memref<1x8x32xf32, #tpu.memory_space<vmem>>, %arg4: memref<1x1x32xf32, #tpu.memory_space<vmem>>, %arg5: memref<1x1x32xf32, #tpu.memory_space<vmem>>, %arg6: memref<1x1x32xf32, #tpu.memory_space<vmem>>, %arg7: memref<1x1x32xf32, #tpu.memory_space<vmem>>, %arg8: memref<32x96xf32, #tpu.memory_space<vmem>>, %arg9: memref<1x96xf32, #tpu.memory_space<vmem>>, %arg10: memref<1x8x96xf32, #tpu.memory_space<vmem>>, %arg11: memref<8x32xbf16, #tpu.memory_space<vmem>>) attributes {dimension_semantics = [#tpu.dimension_semantics<parallel>, #tpu.dimension_semantics<parallel>, #tpu.dimension_semantics<arbitrary>], iteration_bounds = array<i64: 2, 1, 1>, scalar_prefetch = 0 : i64, scratch_operands = 1 : i64, tpu.core_type = #tpu.core_type<tc>, window_params = [{transform_indices = @transform_0, window_bounds = array<i64: 1, 8, 32>}, {pipeline_mode = #tpu.pipeline_mode<synchronous>, transform_indices = @transform_1, window_bounds = array<i64: 1, 1, 32>}, {pipeline_mode = #tpu.pipeline_mode<synchronous>, transform_indices = @transform_2, window_bounds = array<i64: 1, 1, 32>}, {transform_indices = @transform_3, window_bounds = array<i64: 1, 1, 32>}, {transform_indices = @transform_4, window_bounds = array<i64: 1, 1, 32>}, {transform_indices = @transform_5, window_bounds = array<i64: 32, 96>}, {transform_indices = @transform_6, window_bounds = array<i64: 1, 96>}, {transform_indices = @transform_7, window_bounds = array<i64: 1, 8, 96>}]} {
    %c0_i32 = arith.constant 0 : i32
    %0 = arith.cmpi eq, %arg2, %c0_i32 : i32
    %1 = arith.extui %0 : i1 to i32
    %c0_i32_0 = arith.constant 0 : i32
    %2 = arith.cmpi ne, %1, %c0_i32_0 : i32
    scf.if %2 {
      %c0_9 = arith.constant 0 : index
      %c0_10 = arith.constant 0 : index
      %c0_11 = arith.constant 0 : index
      %13 = vector.load %arg3[%c0_9, %c0_10, %c0_11] : memref<1x8x32xf32, #tpu.memory_space<vmem>>, vector<1x8x32xf32>
      %14 = vector.shape_cast %13 : vector<1x8x32xf32> to vector<8x32xf32>
      %cst_12 = arith.constant dense<0.000000e+00> : vector<8xf32>
      %15 = vector.multi_reduction <add>, %14, %cst_12 [1] : vector<8x32xf32> to vector<8xf32>
      %16 = vector.shape_cast %15 : vector<8xf32> to vector<8x1xf32>
      %cst_13 = arith.constant 3.200000e+01 : f32
      %17 = vector.broadcast %cst_13 : f32 to vector<8x1xf32>
      %18 = arith.divf %16, %17 : vector<8x1xf32>
      %19 = vector.broadcast %18 : vector<8x1xf32> to vector<8x32xf32>
      %20 = arith.subf %14, %19 : vector<8x32xf32>
      %21 = arith.mulf %20, %20 : vector<8x32xf32>
      %cst_14 = arith.constant dense<0.000000e+00> : vector<8xf32>
      %22 = vector.multi_reduction <add>, %21, %cst_14 [1] : vector<8x32xf32> to vector<8xf32>
      %23 = vector.shape_cast %22 : vector<8xf32> to vector<8x1xf32>
      %cst_15 = arith.constant 3.200000e+01 : f32
      %24 = vector.broadcast %cst_15 : f32 to vector<8x1xf32>
      %25 = arith.divf %23, %24 : vector<8x1xf32>
      %26 = vector.broadcast %18 : vector<8x1xf32> to vector<8x32xf32>
      %27 = arith.subf %14, %26 : vector<8x32xf32>
      %cst_16 = arith.constant 9.99999974E-6 : f32
      %28 = vector.broadcast %cst_16 : f32 to vector<8x1xf32>
      %29 = arith.addf %25, %28 : vector<8x1xf32>
      %30 = math.rsqrt %29 : vector<8x1xf32>
      %31 = vector.broadcast %30 : vector<8x1xf32> to vector<8x32xf32>
      %32 = arith.mulf %27, %31 : vector<8x32xf32>
      %c0_17 = arith.constant 0 : index
      %c0_18 = arith.constant 0 : index
      %c0_19 = arith.constant 0 : index
      %33 = vector.load %arg4[%c0_17, %c0_18, %c0_19] : memref<1x1x32xf32, #tpu.memory_space<vmem>>, vector<1x1x32xf32>
      %34 = vector.shape_cast %33 : vector<1x1x32xf32> to vector<1x32xf32>
      %35 = vector.broadcast %34 : vector<1x32xf32> to vector<8x32xf32>
      %36 = arith.mulf %32, %35 : vector<8x32xf32>
      %c0_20 = arith.constant 0 : index
      %c0_21 = arith.constant 0 : index
      %c0_22 = arith.constant 0 : index
      %37 = vector.load %arg5[%c0_20, %c0_21, %c0_22] : memref<1x1x32xf32, #tpu.memory_space<vmem>>, vector<1x1x32xf32>
      %38 = vector.shape_cast %37 : vector<1x1x32xf32> to vector<1x32xf32>
      %39 = vector.broadcast %38 : vector<1x32xf32> to vector<8x32xf32>
      %40 = arith.addf %36, %39 : vector<8x32xf32>
      %c0_23 = arith.constant 0 : index
      %c0_24 = arith.constant 0 : index
      %c0_25 = arith.constant 0 : index
      %41 = vector.load %arg6[%c0_23, %c0_24, %c0_25] : memref<1x1x32xf32, #tpu.memory_space<vmem>>, vector<1x1x32xf32>
      %42 = vector.shape_cast %41 : vector<1x1x32xf32> to vector<1x32xf32>
      %cst_26 = arith.constant 1.000000e+00 : f32
      %43 = vector.broadcast %cst_26 : f32 to vector<1x32xf32>
      %44 = arith.addf %43, %42 : vector<1x32xf32>
      %45 = vector.broadcast %44 : vector<1x32xf32> to vector<8x32xf32>
      %46 = arith.mulf %40, %45 : vector<8x32xf32>
      %c0_27 = arith.constant 0 : index
      %c0_28 = arith.constant 0 : index
      %c0_29 = arith.constant 0 : index
      %47 = vector.load %arg7[%c0_27, %c0_28, %c0_29] : memref<1x1x32xf32, #tpu.memory_space<vmem>>, vector<1x1x32xf32>
      %48 = vector.shape_cast %47 : vector<1x1x32xf32> to vector<1x32xf32>
      %49 = vector.broadcast %48 : vector<1x32xf32> to vector<8x32xf32>
      %50 = arith.addf %46, %49 : vector<8x32xf32>
      %51 = arith.truncf %50 : vector<8x32xf32> to vector<8x32xbf16>
      %c0_30 = arith.constant 0 : index
      %c0_31 = arith.constant 0 : index
      %52 = vector.load %arg11[%c0_30, %c0_31] : memref<8x32xbf16, #tpu.memory_space<vmem>>, vector<8x32xbf16>
      tpu.vector_store %arg11[%c0_30, %c0_31], %51 {strides = array<i32>} : memref<8x32xbf16, #tpu.memory_space<vmem>>, vector<8x32xbf16>,
    } else {
    }
    %c0 = arith.constant 0 : index
    %c0_1 = arith.constant 0 : index
    %3 = vector.load %arg11[%c0, %c0_1] : memref<8x32xbf16, #tpu.memory_space<vmem>>, vector<8x32xbf16>
    %c0_2 = arith.constant 0 : index
    %c0_3 = arith.constant 0 : index
    %4 = vector.load %arg8[%c0_2, %c0_3] : memref<32x96xf32, #tpu.memory_space<vmem>>, vector<32x96xf32>
    %5 = arith.truncf %4 : vector<32x96xf32> to vector<32x96xbf16>
    %cst = arith.constant dense<0.000000e+00> : vector<8x96xf32>
    %6 = tpu.matmul %3, %5, %cst {dimension_numbers = #tpu.dot_dimension_numbers<[1], [0], [0], [1], [0, 0, 1, 1], [], []>} : vector<8x32xbf16>, vector<32x96xbf16>, vector<8x96xf32> -> vector<8x96xf32>
    %c0_4 = arith.constant 0 : index
    %c0_5 = arith.constant 0 : index
    %7 = vector.load %arg9[%c0_4, %c0_5] : memref<1x96xf32, #tpu.memory_space<vmem>>, vector<1x96xf32>
    %8 = vector.broadcast %7 : vector<1x96xf32> to vector<8x96xf32>
    %9 = arith.addf %6, %8 : vector<8x96xf32>
    %c0_6 = arith.constant 0 : index
    %c0_7 = arith.constant 0 : index
    %c0_8 = arith.constant 0 : index
    %10 = vector.load %arg10[%c0_6, %c0_7, %c0_8] : memref<1x8x96xf32, #tpu.memory_space<vmem>>, vector<1x8x96xf32>
    %11 = vector.shape_cast %10 : vector<1x8x96xf32> to vector<8x96xf32>
    %12 = vector.shape_cast %9 : vector<8x96xf32> to vector<1x8x96xf32>
    tpu.vector_store %arg10[%c0_6, %c0_7, %c0_8], %12 {strides = array<i32>} : memref<1x8x96xf32, #tpu.memory_space<vmem>>, vector<1x8x96xf32>,
    return
  }
  func.func @transform_0(%arg0: i32, %arg1: i32, %arg2: i32) -> (i32, i32, i32) {
    %c0_i32 = arith.constant 0 : i32
    %c0_i32_0 = arith.constant 0 : i32
    return %arg0, %arg1, %c0_i32 : i32, i32, i32
  }
  func.func @transform_1(%arg0: i32, %arg1: i32, %arg2: i32) -> (i32, i32, i32) {
    %c0_i32 = arith.constant 0 : i32
    %c0_i32_0 = arith.constant 0 : i32
    %c0_i32_1 = arith.constant 0 : i32
    %c0_i32_2 = arith.constant 0 : i32
    return %c0_i32, %c0_i32_0, %c0_i32_1 : i32, i32, i32
  }
  func.func @transform_2(%arg0: i32, %arg1: i32, %arg2: i32) -> (i32, i32, i32) {
    %c0_i32 = arith.constant 0 : i32
    %c0_i32_0 = arith.constant 0 : i32
    %c0_i32_1 = arith.constant 0 : i32
    %c0_i32_2 = arith.constant 0 : i32
    return %c0_i32, %c0_i32_0, %c0_i32_1 : i32, i32, i32
  }
  func.func @transform_3(%arg0: i32, %arg1: i32, %arg2: i32) -> (i32, i32, i32) {
    %c0_i32 = arith.constant 0 : i32
    %c0_i32_0 = arith.constant 0 : i32
    %c0_i32_1 = arith.constant 0 : i32
    return %arg0, %c0_i32, %c0_i32_0 : i32, i32, i32
  }
  func.func @transform_4(%arg0: i32, %arg1: i32, %arg2: i32) -> (i32, i32, i32) {
    %c0_i32 = arith.constant 0 : i32
    %c0_i32_0 = arith.constant 0 : i32
    %c0_i32_1 = arith.constant 0 : i32
    return %arg0, %c0_i32, %c0_i32_0 : i32, i32, i32
  }
  func.func @transform_5(%arg0: i32, %arg1: i32, %arg2: i32) -> (i32, i32) {
    %c0_i32 = arith.constant 0 : i32
    %c0_i32_0 = arith.constant 0 : i32
    return %c0_i32, %arg2 : i32, i32
  }
  func.func @transform_6(%arg0: i32, %arg1: i32, %arg2: i32) -> (i32, i32) {
    %c0_i32 = arith.constant 0 : i32
    %c0_i32_0 = arith.constant 0 : i32
    return %c0_i32, %arg2 : i32, i32
  }
  func.func @transform_7(%arg0: i32, %arg1: i32, %arg2: i32) -> (i32, i32, i32) {
    %c0_i32 = arith.constant 0 : i32
    return %arg0, %arg1, %arg2 : i32, i32, i32
  }
}

</mosaic_0001>

<llo_original>
// kernel: tpu_custom_call.1
$region0: #{tpu_custom_call.1}
  #allocation0 [shape = 'u32[]', space=smem, size = 0x4, offset = 0x4, fixed_abs, tag = 'smem constant byte address 0x4 - core index']
  #allocation1 [shape = 'u32[144,128]{1,0:T(1,128)}', space=vmem, size = 0x12000, scoped, tag = 'internal scratch']
  #allocation2 [shape = 'bf16[8,32]{1,0:T(8,128)(2,1)}', space=vmem, size = 0x800, scoped, tag = 'scratch operand']
  %s0 = inlined_call_operand.hbm [shape: f32[2,8,32], index: 0, kind: input, shape index: {}]
  %s1 = inlined_call_operand.vmem [shape: f32[1,1,32], index: 1, kind: input, shape index: {}]
  %s2 = inlined_call_operand.hbm [shape: f32[1,1,32], index: 2, kind: input, shape index: {}]
  %s3 = inlined_call_operand.vmem [shape: f32[2,1,32], index: 3, kind: input, shape index: {}]
  %s4 = inlined_call_operand.vmem [shape: f32[2,1,32], index: 4, kind: input, shape index: {}]
  %s5 = inlined_call_operand.hbm [shape: f32[32,96], index: 5, kind: input, shape index: {}]
  %s6 = inlined_call_operand.vmem [shape: f32[1,96], index: 6, kind: input, shape index: {}]
  %s7 = inlined_call_operand.hbm [shape: f32[2,8,96], index: 7, kind: output, shape index: {}]
  %s8 = sld [smem:[#allocation0]]
  $region77: #{tpu_custom_call.1} parent=0
    _
  %s10 = ssub.s32 1, %s8
  %s11 = scalar_select 0, %s10, %s8
  $region1: #{tpu_custom_call.1} parent=0
    #allocation3 [shape = 'u8[8192]{0}', space=vmem, size = 0x2000, scoped, tag = 'input window, operand 0']
    #allocation4 [shape = 's32[2]{0}', space=sflag, size = 0x8, scoped, tag = 'scoped memory for tpu_custom_call.1']
    #allocation5 [shape = 's32[2]{0}', space=sflag, size = 0x8, scoped, tag = 'scoped memory for tpu_custom_call.1']
    #allocation6 [shape = 'u8[512]{0}', space=vmem, size = 0x400, scoped, tag = 'input window, operand 2, single buffered']
    #allocation7 [shape = 's32[1]{0}', space=sflag, size = 0x4, scoped, tag = 'scoped memory for tpu_custom_call.1']
    #allocation8 [shape = 'u8[16384]{0}', space=vmem, size = 0x4000, scoped, tag = 'input window, operand 5, single buffered']
    #allocation9 [shape = 'u8[8192]{0}', space=vmem, size = 0x2000, scoped, tag = 'output window, operand 0']
    %12 = vsyncpa [#allocation4], 0
    %s13 = scalar_lea.sflag [#allocation4], 1
    %14 = vsyncpa %s13, 0
    %15 = vsyncpa [#allocation7], 0
    %16 = vsyncpa [#allocation5], 0
    %s17 = scalar_lea.sflag [#allocation5], 1
    %18 = vsyncpa %s17, 0
    loop: start=0, step=1, limit=4
    $region2: #{tpu_custom_call.1} parent=1 // loop_pre_header
      _
    $region3: #{tpu_custom_call.1} parent=1 // loop_header
      %s20 = sphi 0, %s24
      %p21 = scmp.ge.s32.totalorder %s20, 4
      %s27 = sphi 0, %s46
      %s28 = sphi 0, %s42
      %s29 = sphi 0, %s38
      %s30 = sphi 0, %s27
      %s31 = sphi 0, %s28
      %s32 = sphi 0, %s29
      %s33 = sphi 0, %s30
      %s34 = sphi 0, %s31
      %s35 = sphi 0, %s32
      %s51 = sphi 0, %s53
      %s54 = sphi 0, %s51
      %s55 = sphi 0, %s54
      %s71 = sphi 0, %s55
      %s75 = sphi 0, %s75
      %s77 = sphi 0, %s75
      %s78 = sphi 0, %s77
      %s92 = sphi 0, %s78
      %s96 = sphi 0, %s96
      %s98 = sphi 0, %s96
      %s99 = sphi 0, %s98
      %s113 = sphi 0, %s99
      %s119 = sphi 0, %s121
      %s122 = sphi 0, %s119
      %s123 = sphi 0, %s122
      %s139 = sphi 0, %s123
      %s145 = sphi 0, %s147
      %s148 = sphi 0, %s145
      %s149 = sphi 0, %s148
      %s165 = sphi 0, %s149
      %s171 = sphi 0, %s173
      %s174 = sphi 0, %s171
      %s175 = sphi 0, %s174
      %s191 = sphi 0, %s175
      %s197 = sphi 0, %s199
      %s200 = sphi 0, %s197
      %s201 = sphi 0, %s200
      %s217 = sphi 0, %s201
      %s227 = sphi 0, %s229
      %s230 = sphi 0, %s227
      %s231 = sphi 0, %s230
      %s247 = sphi 0, %s231
    $region4: #{tpu_custom_call.1} parent=1 // loop_header_branch
      %23 = sbr.rel (%p21) target = $region8
    $region5: #{tpu_custom_call.1} parent=1 // loop_body
      %s25 = ssub.s32 %s20, 1
      %s26 = ssub.s32 %s20, 2
      %s36 = sadd.s32 1, %s29
      %p37 = scmp.ge.s32.totalorder %s36, 1
      %s38 = scalar_select %p37, 0, %s36
      %s39 = sadd.s32 1, %s28
      %s40 = scalar_select %p37, %s39, %s28
      %p41 = scmp.ge.s32.totalorder %s40, 1
      %s42 = scalar_select %p41, 0, %s40
      %s43 = sadd.s32 1, %s27
      %s44 = scalar_select %p41, %s43, %s27
      %p45 = scmp.ge.s32.totalorder %s44, 2
      %s46 = scalar_select %p45, 0, %s44
      %s47 = ssub.s32 %s27, %s46
      %s48 = ssub.s32 %s28, %s42
      %s49 = sor.u32 %s47, %s48
      %p50 = scmp.eq.s32.totalorder %s49, 0
      %s52 = sadd.s32 %s51, 1
      %s53 = scalar_select %p50, %s51, %s52
      %p56 = pneg %p50
      %p57 = scmp.eq.s32.totalorder %s20, 1
      %p58 = por %p56, %p57
      %p59 = scmp.ne.s32.totalorder %s51, %s54
      %p60 = scmp.eq.s32.totalorder %s20, 0
      %p61 = por %p59, %p60
      %p62 = scmp.ne.s32.totalorder %s51, %s54
      %p63 = scmp.eq.s32.totalorder %s25, 1
      %p64 = por %p62, %p63
      %p65 = scmp.ne.s32.totalorder %s54, %s55
      %p66 = scmp.eq.s32.totalorder %s25, 0
      %p67 = por %p65, %p66
      %p68 = scmp.ne.s32.totalorder %s54, %s55
      %p69 = scmp.eq.s32.totalorder %s26, 1
      %p70 = por %p68, %p69
      %p72 = scmp.ne.s32.totalorder %s55, %s71
      %p73 = scmp.eq.s32.totalorder %s26, 0
      %p74 = por %p72, %p73
      %s76 = sadd.s32 %s75, 1
      %p79 = scmp.eq.s32.totalorder %s20, 1
      %p80 = scmp.ne.s32.totalorder %s75, %s77
      %p81 = scmp.eq.s32.totalorder %s20, 0
      %p82 = por %p80, %p81
      %p83 = scmp.ne.s32.totalorder %s75, %s77
      %p84 = scmp.eq.s32.totalorder %s25, 1
      %p85 = por %p83, %p84
      %p86 = scmp.ne.s32.totalorder %s77, %s78
      %p87 = scmp.eq.s32.totalorder %s25, 0
      %p88 = por %p86, %p87
      %p89 = scmp.ne.s32.totalorder %s77, %s78
      %p90 = scmp.eq.s32.totalorder %s26, 1
      %p91 = por %p89, %p90
      %p93 = scmp.ne.s32.totalorder %s78, %s92
      %p94 = scmp.eq.s32.totalorder %s26, 0
      %p95 = por %p93, %p94
      %s97 = sadd.s32 %s96, 1
      %p100 = scmp.eq.s32.totalorder %s20, 1
      %p101 = scmp.ne.s32.totalorder %s96, %s98
      %p102 = scmp.eq.s32.totalorder %s20, 0
      %p103 = por %p101, %p102
      %p104 = scmp.ne.s32.totalorder %s96, %s98
      %p105 = scmp.eq.s32.totalorder %s25, 1
      %p106 = por %p104, %p105
      %p107 = scmp.ne.s32.totalorder %s98, %s99
      %p108 = scmp.eq.s32.totalorder %s25, 0
      %p109 = por %p107, %p108
      %p110 = scmp.ne.s32.totalorder %s98, %s99
      %p111 = scmp.eq.s32.totalorder %s26, 1
      %p112 = por %p110, %p111
      %p114 = scmp.ne.s32.totalorder %s99, %s113
      %p115 = scmp.eq.s32.totalorder %s26, 0
      %p116 = por %p114, %p115
      %s117 = ssub.s32 %s27, %s46
      %p118 = scmp.eq.s32.totalorder %s117, 0
      %s120 = sadd.s32 %s119, 1
      %s121 = scalar_select %p118, %s119, %s120
      %p124 = pneg %p118
      %p125 = scmp.eq.s32.totalorder %s20, 1
      %p126 = por %p124, %p125
      %p127 = scmp.ne.s32.totalorder %s119, %s122
      %p128 = scmp.eq.s32.totalorder %s20, 0
      %p129 = por %p127, %p128
      %p130 = scmp.ne.s32.totalorder %s119, %s122
      %p131 = scmp.eq.s32.totalorder %s25, 1
      %p132 = por %p130, %p131
      %p133 = scmp.ne.s32.totalorder %s122, %s123
      %p134 = scmp.eq.s32.totalorder %s25, 0
      %p135 = por %p133, %p134
      %p136 = scmp.ne.s32.totalorder %s122, %s123
      %p137 = scmp.eq.s32.totalorder %s26, 1
      %p138 = por %p136, %p137
      %p140 = scmp.ne.s32.totalorder %s123, %s139
      %p141 = scmp.eq.s32.totalorder %s26, 0
      %p142 = por %p140, %p141
      %s143 = ssub.s32 %s27, %s46
      %p144 = scmp.eq.s32.totalorder %s143, 0
      %s146 = sadd.s32 %s145, 1
      %s147 = scalar_select %p144, %s145, %s146
      %p150 = pneg %p144
      %p151 = scmp.eq.s32.totalorder %s20, 1
      %p152 = por %p150, %p151
      %p153 = scmp.ne.s32.totalorder %s145, %s148
      %p154 = scmp.eq.s32.totalorder %s20, 0
      %p155 = por %p153, %p154
      %p156 = scmp.ne.s32.totalorder %s145, %s148
      %p157 = scmp.eq.s32.totalorder %s25, 1
      %p158 = por %p156, %p157
      %p159 = scmp.ne.s32.totalorder %s148, %s149
      %p160 = scmp.eq.s32.totalorder %s25, 0
      %p161 = por %p159, %p160
      %p162 = scmp.ne.s32.totalorder %s148, %s149
      %p163 = scmp.eq.s32.totalorder %s26, 1
      %p164 = por %p162, %p163
      %p166 = scmp.ne.s32.totalorder %s149, %s165
      %p167 = scmp.eq.s32.totalorder %s26, 0
      %p168 = por %p166, %p167
      %s169 = ssub.s32 %s29, %s38
      %p170 = scmp.eq.s32.totalorder %s169, 0
      %s172 = sadd.s32 %s171, 1
      %s173 = scalar_select %p170, %s171, %s172
      %p176 = pneg %p170
      %p177 = scmp.eq.s32.totalorder %s20, 1
      %p178 = por %p176, %p177
      %p179 = scmp.ne.s32.totalorder %s171, %s174
      %p180 = scmp.eq.s32.totalorder %s20, 0
      %p181 = por %p179, %p180
      %p182 = scmp.ne.s32.totalorder %s171, %s174
      %p183 = scmp.eq.s32.totalorder %s25, 1
      %p184 = por %p182, %p183
      %p185 = scmp.ne.s32.totalorder %s174, %s175
      %p186 = scmp.eq.s32.totalorder %s25, 0
      %p187 = por %p185, %p186
      %p188 = scmp.ne.s32.totalorder %s174, %s175
      %p189 = scmp.eq.s32.totalorder %s26, 1
      %p190 = por %p188, %p189
      %p192 = scmp.ne.s32.totalorder %s175, %s191
      %p193 = scmp.eq.s32.totalorder %s26, 0
      %p194 = por %p192, %p193
      %s195 = ssub.s32 %s29, %s38
      %p196 = scmp.eq.s32.totalorder %s195, 0
      %s198 = sadd.s32 %s197, 1
      %s199 = scalar_select %p196, %s197, %s198
      %p202 = pneg %p196
      %p203 = scmp.eq.s32.totalorder %s20, 1
      %p204 = por %p202, %p203
      %p205 = scmp.ne.s32.totalorder %s197, %s200
      %p206 = scmp.eq.s32.totalorder %s20, 0
      %p207 = por %p205, %p206
      %p208 = scmp.ne.s32.totalorder %s197, %s200
      %p209 = scmp.eq.s32.totalorder %s25, 1
      %p210 = por %p208, %p209
      %p211 = scmp.ne.s32.totalorder %s200, %s201
      %p212 = scmp.eq.s32.totalorder %s25, 0
      %p213 = por %p211, %p212
      %p214 = scmp.ne.s32.totalorder %s200, %s201
      %p215 = scmp.eq.s32.totalorder %s26, 1
      %p216 = por %p214, %p215
      %p218 = scmp.ne.s32.totalorder %s201, %s217
      %p219 = scmp.eq.s32.totalorder %s26, 0
      %p220 = por %p218, %p219
      %s221 = ssub.s32 %s27, %s46
      %s222 = ssub.s32 %s28, %s42
      %s223 = sor.u32 %s221, %s222
      %s224 = ssub.s32 %s29, %s38
      %s225 = sor.u32 %s223, %s224
      %p226 = scmp.eq.s32.totalorder %s225, 0
      %s228 = sadd.s32 %s227, 1
      %s229 = scalar_select %p226, %s227, %s228
      %p232 = pneg %p226
      %p233 = scmp.eq.s32.totalorder %s20, 1
      %p234 = por %p232, %p233
      %p235 = scmp.ne.s32.totalorder %s227, %s230
      %p236 = scmp.eq.s32.totalorder %s20, 0
      %p237 = por %p235, %p236
      %p238 = scmp.ne.s32.totalorder %s227, %s230
      %p239 = scmp.eq.s32.totalorder %s25, 1
      %p240 = por %p238, %p239
      %p241 = scmp.ne.s32.totalorder %s230, %s231
      %p242 = scmp.eq.s32.totalorder %s25, 0
      %p243 = por %p241, %p242
      %p244 = scmp.ne.s32.totalorder %s230, %s231
      %p245 = scmp.eq.s32.totalorder %s26, 1
      %p246 = por %p244, %p245
      %p248 = scmp.ne.s32.totalorder %s231, %s247
      %p249 = scmp.eq.s32.totalorder %s26, 0
      %p250 = por %p248, %p249
      %p251 = scmp.le.s32.totalorder 1, %s20
      %p252 = scmp.lt.s32.totalorder %s20, 3
      %p253 = pnand %p251, %p252
      %p254 = pneg %p253
      // Predicated region
      $region9: #{tpu_custom_call.1} parent=5 // pred_check
        _
      $region10: #{tpu_custom_call.1} parent=5 // pred_check_branch
        %256 = sbr.rel (%p253) target = $region12
      $region11: #{tpu_custom_call.1} parent=5 // pred_region
        %s257 = ssub.s32 %s20, 1
        // Predicated region
        $region13: #{tpu_custom_call.1} parent=11 // pred_check
          %p258 = pneg %p88
        $region14: #{tpu_custom_call.1} parent=11 // pred_check_branch
          %260 = sbr.rel (%p258) target = $region16
        $region15: #{tpu_custom_call.1} parent=11 // pred_region
          _
        $region16: #{tpu_custom_call.1} parent=11 // pred_fallthru
          _
        // Predicated region
        $region17: #{tpu_custom_call.1} parent=11 // pred_check
          %p261 = pneg %p109
        $region18: #{tpu_custom_call.1} parent=11 // pred_check_branch
          %263 = sbr.rel (%p261) target = $region20
        $region19: #{tpu_custom_call.1} parent=11 // pred_region
          %s265 = ssub.s32 16, 16
          %266 = vsyncadd [#allocation7], %s265
          %s268 = sshll.u32 [#allocation6], 4
          %s269 = int_to_ptr.vmem [resolvable:$true] %s268
          %271 = dma.hbm_to_vmem [thread:$0]  %s2, 16, %s269, [#allocation7]
        $region20: #{tpu_custom_call.1} parent=11 // pred_fallthru
          _
        // Predicated region
        $region21: #{tpu_custom_call.1} parent=11 // pred_check
          %p272 = pneg %p187
        $region22: #{tpu_custom_call.1} parent=11 // pred_check_branch
          %274 = sbr.rel (%p272) target = $region24
        $region23: #{tpu_custom_call.1} parent=11 // pred_region
          %s276 = ssub.s32 512, 512
          %277 = vsyncadd [#allocation7], %s276
          %s278 = smul.addr %s32, 128
          %s279 = scalar_lea.hbm %s5, %s278
          %s280 = sshll.u32 [#allocation8], 4
          %s281 = int_to_ptr.vmem [resolvable:$true] %s280
          %286 = dma.hbm_to_vmem [thread:$0]  %s279, 512, %s281, [#allocation7], 128, 128, 8
        $region24: #{tpu_custom_call.1} parent=11 // pred_fallthru
          _
        // Predicated region
        $region25: #{tpu_custom_call.1} parent=11 // pred_check
          %p287 = pneg %p213
        $region26: #{tpu_custom_call.1} parent=11 // pred_check_branch
          %289 = sbr.rel (%p287) target = $region28
        $region27: #{tpu_custom_call.1} parent=11 // pred_region
          %p290 = scmp.lt.s32.totalorder %s32, 0
          %s291 = scalar_select %p290, %s32, 0
          %s292 = scalar_lea.vmem %s6, %s291
        $region28: #{tpu_custom_call.1} parent=11 // pred_fallthru
          _
      $region12: #{tpu_custom_call.1} parent=5 // pred_fallthru
        _
      %p293 = scmp.lt.s32.totalorder %s20, 2
      // Predicated region
      $region29: #{tpu_custom_call.1} parent=5 // pred_check
        %p294 = pneg %p293
      $region30: #{tpu_custom_call.1} parent=5 // pred_check_branch
        %296 = sbr.rel (%p294) target = $region32
      $region31: #{tpu_custom_call.1} parent=5 // pred_region
        // Predicated region
        $region33: #{tpu_custom_call.1} parent=31 // pred_check
          %p297 = pneg %p61
        $region34: #{tpu_custom_call.1} parent=31 // pred_check_branch
          %299 = sbr.rel (%p297) target = $region36
        $region35: #{tpu_custom_call.1} parent=31 // pred_region
          %s300 = sand.u32 %s51, 1
          %s301 = scalar_lea.sflag [#allocation4], %s300
          %s302 = sand.u32 %s51, 1
          %s303 = smul.addr %s302, 8
          %s304 = scalar_lea.vmem [#allocation3], %s303
          %s306 = ssub.s32 128, 128
          %307 = vsyncadd %s301, %s306
          %s308 = sadd.s32 %s28, %s27
          %s309 = smul.addr %s308, 128
          %s310 = scalar_lea.hbm %s0, %s309
          %s312 = sshll.u32 %s304, 4
          %s313 = int_to_ptr.vmem [resolvable:$true] %s312
          %315 = dma.hbm_to_vmem [thread:$0]  %s310, 128, %s313, %s301
        $region36: #{tpu_custom_call.1} parent=31 // pred_fallthru
          _
        // Predicated region
        $region37: #{tpu_custom_call.1} parent=31 // pred_check
          %p316 = pneg %p129
        $region38: #{tpu_custom_call.1} parent=31 // pred_check_branch
          %318 = sbr.rel (%p316) target = $region40
        $region39: #{tpu_custom_call.1} parent=31 // pred_region
          %p319 = scmp.lt.s32.totalorder %s27, 1
          %s320 = scalar_select %p319, %s27, 1
          %s321 = scalar_lea.vmem %s3, %s320
        $region40: #{tpu_custom_call.1} parent=31 // pred_fallthru
          _
        // Predicated region
        $region41: #{tpu_custom_call.1} parent=31 // pred_check
          %p322 = pneg %p155
        $region42: #{tpu_custom_call.1} parent=31 // pred_check_branch
          %324 = sbr.rel (%p322) target = $region44
        $region43: #{tpu_custom_call.1} parent=31 // pred_region
          %p325 = scmp.lt.s32.totalorder %s27, 1
          %s326 = scalar_select %p325, %s27, 1
          %s327 = scalar_lea.vmem %s4, %s326
        $region44: #{tpu_custom_call.1} parent=31 // pred_fallthru
          _
      $region32: #{tpu_custom_call.1} parent=5 // pred_fallthru
        _
      %p328 = scmp.le.s32.totalorder 1, %s20
      %p329 = scmp.lt.s32.totalorder %s20, 3
      %p330 = pnand %p328, %p329
      %p331 = pneg %p330
      // Predicated region
      $region45: #{tpu_custom_call.1} parent=5 // pred_check
        _
      $region46: #{tpu_custom_call.1} parent=5 // pred_check_branch
        %333 = sbr.rel (%p330) target = $region48
      $region47: #{tpu_custom_call.1} parent=5 // pred_region
        %s334 = ssub.s32 %s20, 1
        %s335 = sand.u32 %s54, 1
        %s336 = scalar_lea.sflag [#allocation4], %s335
        %s337 = sand.u32 %s54, 1
        %s338 = smul.addr %s337, 8
        %s339 = scalar_lea.vmem [#allocation3], %s338
        // Predicated region
        $region49: #{tpu_custom_call.1} parent=47 // pred_check
          %p340 = pneg %p67
        $region50: #{tpu_custom_call.1} parent=47 // pred_check_branch
          %342 = sbr.rel (%p340) target = $region52
        $region51: #{tpu_custom_call.1} parent=47 // pred_region
          %343 = dma.done %s336, 128
        $region52: #{tpu_custom_call.1} parent=47 // pred_fallthru
          _
        // Predicated region
        $region53: #{tpu_custom_call.1} parent=47 // pred_check
          %p344 = pneg %p109
        $region54: #{tpu_custom_call.1} parent=47 // pred_check_branch
          %346 = sbr.rel (%p344) target = $region56
        $region55: #{tpu_custom_call.1} parent=47 // pred_region
          %347 = dma.done [#allocation7], 16
        $region56: #{tpu_custom_call.1} parent=47 // pred_fallthru
          _
        // Predicated region
        $region57: #{tpu_custom_call.1} parent=47 // pred_check
          %p348 = pneg %p187
        $region58: #{tpu_custom_call.1} parent=47 // pred_check_branch
          %350 = sbr.rel (%p348) target = $region60
        $region59: #{tpu_custom_call.1} parent=47 // pred_region
          %351 = dma.done [#allocation7], 512
        $region60: #{tpu_custom_call.1} parent=47 // pred_fallthru
          _
        %s352 = sand.u32 %s54, 1
        %s353 = scalar_lea.sflag [#allocation4], %s352
        %s354 = sand.u32 %s54, 1
        %s355 = smul.addr %s354, 8
        %s356 = scalar_lea.vmem [#allocation3], %s355
        %p357 = pneg %p67
        %p358 = pneg %p64
        %p359 = pneg %p88
        %p360 = pneg %p85
        %p361 = pneg %p109
        %p362 = pneg %p106
        %p363 = scmp.lt.s32.totalorder %s30, 1
        %s364 = scalar_select %p363, %s30, 1
        %s365 = scalar_lea.vmem %s3, %s364
        %p366 = pneg %p135
        %p367 = pneg %p132
        %p368 = scmp.lt.s32.totalorder %s30, 1
        %s369 = scalar_select %p368, %s30, 1
        %s370 = scalar_lea.vmem %s4, %s369
        %p371 = pneg %p161
        %p372 = pneg %p158
        %p373 = pneg %p187
        %p374 = pneg %p184
        %p375 = scmp.lt.s32.totalorder %s32, 0
        %s376 = scalar_select %p375, %s32, 0
        %s377 = scalar_lea.vmem %s6, %s376
        %p378 = pneg %p213
        %p379 = pneg %p210
        %p380 = pneg %p243
        %p381 = pneg %p240
        %s382 = sand.u32 %s230, 1
        %s383 = scalar_lea.sflag [#allocation5], %s382
        %s384 = sand.u32 %s230, 1
        %s385 = smul.addr %s384, 8
        %s386 = scalar_lea.vmem [#allocation9], %s385
        %p387 = scmp.lt.s32.totalorder %s30, 1
        %s388 = scalar_select %p387, %s30, 1
        %s389 = scalar_lea.vmem %s3, %s388
        %p390 = scmp.lt.s32.totalorder %s30, 1
        %s391 = scalar_select %p390, %s30, 1
        %s392 = scalar_lea.vmem %s4, %s391
        %p393 = scmp.lt.s32.totalorder %s32, 0
        %s394 = scalar_select %p393, %s32, 0
        %s395 = scalar_lea.vmem %s6, %s394
        %p397 = scmp.eq.s32.totalorder %s32, 0
        // Predicated region
        $region61: #{tpu_custom_call.1} parent=47 // pred_check
          %p398 = pneg %p397
        $region62: #{tpu_custom_call.1} parent=47 // pred_check_branch
          %400 = sbr.rel (%p398) target = $region64
        $region63: #{tpu_custom_call.1} parent=47 // pred_region
          %v401 = vld [vmem:[%s339] sm:$0xff]
          %vm402 = vcmask 261120
          %v403 = vsel %vm402, %v401, 0.0
          %404 = vadd.xlane.f32.xlu0 %v403
          %v405 = vpop.xlane.xlu0 %404
          %v406 = vrcp.pop 32.0
          %v407 = vmul.f32 %v405, %v406
          %v408 = vsub.f32 %v401, %v407
          %v409 = vmul.f32 %v408, %v408
          %v410 = vsel %vm402, %v409, 0.0
          %411 = vadd.xlane.f32.xlu0 %v410
          %v412 = vpop.xlane.xlu0 %411
          %v413 = vmul.f32 %v412, %v406
          %v414 = vadd.f32 %v413, 1e-05
          %v415 = vrsqrt.pop %v414
          %v416 = vmul.f32 %v408, %v415
          %v417 = vld [vmem:[%s1] sm:$0x1]
          %v419 = vlaneseq
          %v420 = vshrl.u32 %v419, 7
          %v421 = vsub.s32 0, %v420
          %v422 = vrot.slane %v417, %v421
          %v424 = vmul.f32 %v416, %v422
          %v425 = vld [vmem:[#allocation6] sm:$0x1]
          %v427 = vlaneseq
          %v428 = vshrl.u32 %v427, 7
          %v429 = vsub.s32 0, %v428
          %v430 = vrot.slane %v425, %v429
          %v432 = vadd.f32 %v424, %v430
          %v433 = vld [vmem:[%s389] sm:$0x1]
          %v434 = vadd.f32 %v433, 1.0
          %v436 = vlaneseq
          %v437 = vshrl.u32 %v436, 7
          %v438 = vsub.s32 0, %v437
          %v439 = vrot.slane %v434, %v438
          %v441 = vmul.f32 %v432, %v439
          %v442 = vld [vmem:[%s392] sm:$0x1]
          %v444 = vlaneseq
          %v445 = vshrl.u32 %v444, 7
          %v446 = vsub.s32 0, %v445
          %v447 = vrot.slane %v442, %v446
          %v449 = vadd.f32 %v441, %v447
          %v450 = vpack.c.bf16 %v449, %v449
          %vm451 = vcmask 257024
          %452 = vst.msk [vmem:[#allocation2] sm:$0xf] %vm451, %v450
        $region64: #{tpu_custom_call.1} parent=47 // pred_fallthru
          _
        %v453 = vld [vmem:[#allocation2] sm:$0xf]
        %v454 = vld [vmem:[#allocation8] sm:$0xff]
        %v455 = vld [vmem:[#allocation8 + $0x8] sm:$0xff]
        %v456 = vld [vmem:[#allocation8 + $0x10] sm:$0xff]
        %v457 = vld [vmem:[#allocation8 + $0x18] sm:$0xff]
        %v458 = vpack.c.bf16 %v455, %v454
        %v459 = vpack.c.bf16 %v457, %v456
        %v460 = vld [vmem:[%s395] sm:$0x1]
        %v462 = vlaneseq
        %v463 = vshrl.u32 %v462, 7
        %v464 = vsub.s32 0, %v463
        %v465 = vrot.slane %v460, %v464
        %vm467 = vcmask 261120
        %v469 = vsel %vm467, %v453, 0
        %471 = vmatprep.subr.bf16.mxu0 0
        %472 = vmatpush1.bf16.msra.mxu0 0
        %473 = vmatprep.subr.bf16.mxu0 0
        %474 = vmatpush1.bf16.msra.mxu0 0
        %475 = vmatprep.subr.bf16.mxu0 0
        %476 = vmatpush1.bf16.msra.mxu0 0
        %477 = vmatprep.subr.bf16.mxu0 0
        %478 = vmatpush1.bf16.msra.mxu0 0
        %479 = vmatprep.subr.bf16.mxu0 0
        %480 = vmatpush1.bf16.msra.mxu0 0
        %481 = vmatprep.subr.bf16.mxu0 0
        %482 = vmatpush1.bf16.msra.mxu0 0
        %483 = vmatprep.subr.bf16.mxu0 0
        %484 = vmatpush1.bf16.msra.mxu0 %v459
        %485 = vmatprep.subr.bf16.mxu0 0
        %486 = vmatpush1.bf16.msra.mxu0 %v458
        %487 = vmatprep.subr.bf16.mxu0 0
        %488 = vmatpush2.bf16.msra.mxu0 0
        %489 = vmatprep.subr.bf16.mxu0 0
        %490 = vmatpush2.bf16.msra.mxu0 0
        %491 = vmatprep.subr.bf16.mxu0 0
        %492 = vmatpush2.bf16.msra.mxu0 0
        %493 = vmatprep.subr.bf16.mxu0 0
        %494 = vmatpush2.bf16.msra.mxu0 0
        %495 = vmatprep.subr.bf16.mxu0 0
        %496 = vmatpush2.bf16.msra.mxu0 0
        %497 = vmatprep.subr.bf16.mxu0 0
        %498 = vmatpush2.bf16.msra.mxu0 0
        %499 = vmatprep.subr.bf16.mxu0 0
        %500 = vmatpush2.bf16.msra.mxu0 0
        %501 = vmatprep.subr.bf16.mxu0 0
        %502 = vmatpush2.bf16.msra.mxu0 0
        %503 = vmatprep.mubr.bf16.mxu0 0
        %504 = vmatmul.mubr.bf16.gmra.mxu0 %v469
        %v505 = vpop.f32.mrf.mxu0
        %v506 = vadd.f32 %v465, %v505
        %v507 = vpop.f32.mrf.mxu0
        %v508 = vpop.f32.mrf.mxu0
        %v509 = vpop.f32.mrf.mxu0
        %510 = vdwg.mxu0
        %vm511 = vcmask 785408
        %512 = vst.msk [vmem:[%s386] sm:$0xff] %vm511, %v506
        %s513 = sand.u32 %s230, 1
        %s514 = scalar_lea.sflag [#allocation5], %s513
        %s515 = sand.u32 %s230, 1
        %s516 = smul.addr %s515, 8
        %s517 = scalar_lea.vmem [#allocation9], %s516
        // Predicated region
        $region65: #{tpu_custom_call.1} parent=47 // pred_check
          %p518 = pneg %p240
        $region66: #{tpu_custom_call.1} parent=47 // pred_check_branch
          %520 = sbr.rel (%p518) target = $region68
        $region67: #{tpu_custom_call.1} parent=47 // pred_region
          %s522 = ssub.s32 128, 128
          %523 = vsyncadd %s514, %s522
          %s524 = sadd.s32 %s32, %s31
          %s525 = sadd.s32 %s524, %s30
          %s526 = smul.addr %s525, 128
          %s527 = scalar_lea.hbm %s7, %s526
          %s529 = sshll.u32 %s517, 4
          %s530 = int_to_ptr.vmem [resolvable:$true] %s529
          %532 = dma.vmem_to_hbm [thread:$0]  %s530, 128, %s527, %s514
        $region68: #{tpu_custom_call.1} parent=47 // pred_fallthru
          _
      $region48: #{tpu_custom_call.1} parent=5 // pred_fallthru
        _
      %p533 = scmp.le.s32.totalorder 2, %s20
      // Predicated region
      $region69: #{tpu_custom_call.1} parent=5 // pred_check
        %p534 = pneg %p533
      $region70: #{tpu_custom_call.1} parent=5 // pred_check_branch
        %536 = sbr.rel (%p534) target = $region72
      $region71: #{tpu_custom_call.1} parent=5 // pred_region
        %s537 = ssub.s32 %s20, 2
        // Predicated region
        $region73: #{tpu_custom_call.1} parent=71 // pred_check
          %p538 = pneg %p246
        $region74: #{tpu_custom_call.1} parent=71 // pred_check_branch
          %540 = sbr.rel (%p538) target = $region76
        $region75: #{tpu_custom_call.1} parent=71 // pred_region
          %s541 = sand.u32 %s231, 1
          %s542 = scalar_lea.sflag [#allocation5], %s541
          %s543 = sand.u32 %s231, 1
          %s544 = smul.addr %s543, 8
          %s545 = scalar_lea.vmem [#allocation9], %s544
          %546 = dma.done %s542, 128
        $region76: #{tpu_custom_call.1} parent=71 // pred_fallthru
          _
      $region72: #{tpu_custom_call.1} parent=5 // pred_fallthru
        _
    $region6: #{tpu_custom_call.1} parent=1 // loop_footer
      %s24 = sadd.s32 1, %s20
    $region7: #{tpu_custom_call.1} parent=1 // loop_footer_branch
      %19 = sbr.rel target = $region3
    $region8: #{tpu_custom_call.1} parent=1 // loop_exit
      _
    %547 = vsyncpa [#allocation4], 1
    %s548 = scalar_lea.sflag [#allocation4], 1
    %549 = vsyncpa %s548, 1
    %550 = vsyncpa [#allocation7], 1
    %551 = vsyncpa [#allocation5], 1
    %s552 = scalar_lea.sflag [#allocation5], 1
    %553 = vsyncpa %s552, 1

</llo_original>
